<compile_context>
chip_gen: v6e
topology: v6e:2x2x1
jax: 0.10.0
libtpu: 0.0.40
codegen_flags: <defaults>
</compile_context>

<pallas_src>
import functools

import jax
import jax.numpy as jnp
from jax.experimental import pallas as pl
from jax.experimental.pallas import tpu as pltpu


def _round_up(x, m):
    return ((x + m - 1) // m) * m


# ----------------------------- Pallas kernel ------------------------------ #

def _gcn_fused_kernel(adj_ref, x_ref, w_ref, o_ref, h0_ref, h1_ref, *,
                      num_layers: int):
    """Fused multi-layer GCN: h_{l+1} = relu( adj @ (h_l @ W_l) ).

    adj_ref: (Np, Np)        bf16  normalized adjacency (resident in VMEM)
    x_ref:   (Np, Fp)        bf16  zero-padded node features
    w_ref:   (L, Fp, Fp)     bf16  zero-padded, stacked layer weights
    o_ref:   (Np, Fp)        f32   output slab (lane-dense)
    h0/h1:   (Np, Fp)        f32   ping-pong activation scratch
    """
    adj = adj_ref[...]                                  # load once, reuse every layer
    h0_ref[...] = x_ref[...].astype(jnp.float32)
    bufs = (h0_ref, h1_ref)
    for l in range(num_layers):                         # static unrolled layer loop
        src = bufs[l % 2]
        dst = bufs[(l + 1) % 2]
        # xw = h_l @ W_l   (Np, Fp) x (Fp, Fp) -> f32 accumulate on MXU
        xw = jnp.dot(src[...].astype(jnp.bfloat16), w_ref[l],
                     preferred_element_type=jnp.float32)
        # h = adj @ xw     (Np, Np) x (Np, Fp) -> f32 accumulate on MXU
        h = jnp.dot(adj, xw.astype(jnp.bfloat16),
                    preferred_element_type=jnp.float32)
        dst[...] = jnp.maximum(h, 0.0)                  # relu every layer
    o_ref[...] = bufs[num_layers % 2][...]


def gcn_fused(adj_p, x_p, w_stack, *, num_layers):
    """Single pallas_call over whole (VMEM-resident) arrays; no grid, no
    double-buffering, two f32 VMEM scratch buffers for the activations."""
    n_pad, f_pad = x_p.shape
    kernel = functools.partial(_gcn_fused_kernel, num_layers=num_layers)
    vmem_spec = pl.BlockSpec(memory_space=pltpu.MemorySpace.VMEM)
    return pl.pallas_call(
        kernel,
        out_shape=jax.ShapeDtypeStruct((n_pad, f_pad), jnp.float32),
        in_specs=[vmem_spec, vmem_spec, vmem_spec],
        out_specs=vmem_spec,
        scratch_shapes=[
            pltpu.VMEM((n_pad, f_pad), jnp.float32),
            pltpu.VMEM((n_pad, f_pad), jnp.float32),
        ],
    )(adj_p, x_p, w_stack)


# ------------------------------ JAX glue ---------------------------------- #

def build_normalized_adj(edge_index, num_nodes):
    """Dense normalized adjacency matching PyG gcn_norm semantics:
       - duplicate (non-self-loop) edges sum into the weight and the degree,
       - every node ends up with exactly one self-loop of weight 1,
       - symmetric normalization uses the in-degree (scatter over dst),
       - returned M satisfies  out[dst] = sum_src M[dst, src] * (X W)[src]."""
    src, dst = edge_index[0], edge_index[1]
    a = jnp.zeros((num_nodes, num_nodes), jnp.float32)
    a = a.at[src, dst].add(1.0)          # scatter-add: duplicate edges sum
    idx = jnp.arange(num_nodes)
    a = a.at[idx, idx].set(1.0)          # exactly one unit self-loop per node
    deg = a.sum(axis=0)                  # in-degree (per dst)
    d_inv_sqrt = jnp.where(deg > 0, jax.lax.rsqrt(deg), 0.0)
    # M[d, s] = d^-1/2[d] * a[s, d] * d^-1/2[s]
    return d_inv_sqrt[:, None] * a.T * d_inv_sqrt[None, :]


def init_gcn_params(key, num_feats, dim_hidden, num_classes, num_layers):
    """Glorot-uniform weights matching GCNConv(in, out, bias=False) shapes."""
    if num_layers == 1:
        dims = [(num_feats, num_classes)]
    else:
        dims = [(num_feats, dim_hidden)]
        dims += [(dim_hidden, dim_hidden)] * (num_layers - 2)
        dims += [(dim_hidden, num_classes)]
    weights = []
    for (fin, fout) in dims:
        key, sub = jax.random.split(key)
        limit = jnp.sqrt(6.0 / (fin + fout))
        weights.append(jax.random.uniform(sub, (fin, fout), jnp.float32,
                                          minval=-limit, maxval=limit))
    return weights


def gcn_forward(x, edge_index, weights):
    """Full GCN forward. dropout/dropedge are no-ops (eval mode, dropedge=0);
    batch_norm with type_norm='None' is the identity.

    Pads nodes to a sublane multiple (8) and all feature dims to 128 lanes,
    stacks the weights, runs the fused Pallas kernel once, then slices back."""
    # TODO(synk): type_layer='GCNConv_ACM' hyperplane branch not implemented
    # (depends on external GCN_sphere_layers); standard GCNConv branch only.
    n, f_in = x.shape
    num_layers = len(weights)
    f_out_last = weights[-1].shape[1]
    f_pad = _round_up(max([f_in] + [w.shape[1] for w in weights] + [128]), 128)
    n_pad = _round_up(n, 8)

    adj = build_normalized_adj(edge_index, n)
    adj_p = jnp.zeros((n_pad, n_pad), jnp.float32).at[:n, :n].set(adj)
    x_p = jnp.zeros((n_pad, f_pad), jnp.float32).at[:n, :f_in].set(x)
    w_stack = jnp.zeros((num_layers, f_pad, f_pad), jnp.float32)
    for l, w in enumerate(weights):
        w_stack = w_stack.at[l, :w.shape[0], :w.shape[1]].set(w)

    out_p = gcn_fused(adj_p.astype(jnp.bfloat16),
                      x_p.astype(jnp.bfloat16),
                      w_stack.astype(jnp.bfloat16),
                      num_layers=num_layers)
    return out_p[:n, :f_out_last]


def gcn_forward_ref(x, edge_index, weights):
    """Pure-JAX f32 reference (same math, no padding / no bf16) for validation."""
    adj = build_normalized_adj(edge_index, x.shape[0])
    h = x
    for w in weights:
        h = jnp.maximum(adj @ (h @ w), 0.0)
    return h


# --------------------------------- main ------------------------------------ #

if __name__ == "__main__":
    NUM_NODES = 64
    NUM_FEATS = 16
    DIM_HIDDEN = 32
    NUM_CLASSES = 8
    NUM_LAYERS = 3
    NUM_EDGES = 256

    key = jax.random.PRNGKey(0)
    k_x, k_e, k_w = jax.random.split(key, 3)

    x = jax.random.normal(k_x, (NUM_NODES, NUM_FEATS), jnp.float32)
    edge_index = jax.random.randint(k_e, (2, NUM_EDGES), 0, NUM_NODES,
                                    dtype=jnp.int32)
    weights = init_gcn_params(k_w, NUM_FEATS, DIM_HIDDEN, NUM_CLASSES,
                              NUM_LAYERS)

    out = gcn_forward(x, edge_index, weights)
    jax.block_until_ready(out)

    assert out.shape == (NUM_NODES, NUM_CLASSES)
    assert out.dtype == jnp.float32

    # Validate the bf16-operand / f32-accumulate kernel against an f32 reference.
    ref = gcn_forward_ref(x, edge_index, weights)
    err = float(jnp.max(jnp.abs(out - ref)) / (jnp.max(jnp.abs(ref)) + 1e-6))
    assert err < 5e-2, f"max-normalized error too large: {err}"

    print("KERNEL_OK")
</pallas_src>

<mosaic_0001>
module attributes {stable_mosaic.version = 11 : i64} {
  func.func @_gcn_fused_kernel(%arg0: memref<64x64xbf16, #tpu.memory_space<vmem>>, %arg1: memref<64x128xbf16, #tpu.memory_space<vmem>>, %arg2: memref<3x128x128xbf16, #tpu.memory_space<vmem>>, %arg3: memref<64x128xf32, #tpu.memory_space<vmem>>, %arg4: memref<64x128xf32, #tpu.memory_space<vmem>>, %arg5: memref<64x128xf32, #tpu.memory_space<vmem>>) attributes {dimension_semantics = [], scalar_prefetch = 0 : i64, scratch_operands = 2 : i64, tpu.core_type = #tpu.core_type<tc>} {
    %c0 = arith.constant 0 : index
    %c0_0 = arith.constant 0 : index
    %0 = vector.load %arg0[%c0, %c0_0] : memref<64x64xbf16, #tpu.memory_space<vmem>>, vector<64x64xbf16>
    %c0_1 = arith.constant 0 : index
    %c0_2 = arith.constant 0 : index
    %1 = vector.load %arg1[%c0_1, %c0_2] : memref<64x128xbf16, #tpu.memory_space<vmem>>, vector<64x128xbf16>
    %2 = arith.extf %1 : vector<64x128xbf16> to vector<64x128xf32>
    %c0_3 = arith.constant 0 : index
    %c0_4 = arith.constant 0 : index
    %3 = vector.load %arg4[%c0_3, %c0_4] : memref<64x128xf32, #tpu.memory_space<vmem>>, vector<64x128xf32>
    tpu.vector_store %arg4[%c0_3, %c0_4], %2 {strides = array<i32>} : memref<64x128xf32, #tpu.memory_space<vmem>>, vector<64x128xf32>,
    %c0_5 = arith.constant 0 : index
    %c0_6 = arith.constant 0 : index
    %4 = vector.load %arg4[%c0_5, %c0_6] : memref<64x128xf32, #tpu.memory_space<vmem>>, vector<64x128xf32>
    %5 = arith.truncf %4 : vector<64x128xf32> to vector<64x128xbf16>
    %c0_7 = arith.constant 0 : index
    %c0_8 = arith.constant 0 : index
    %c0_9 = arith.constant 0 : index
    %6 = vector.load %arg2[%c0_7, %c0_8, %c0_9] : memref<3x128x128xbf16, #tpu.memory_space<vmem>>, vector<1x128x128xbf16>
    %7 = vector.shape_cast %6 : vector<1x128x128xbf16> to vector<128x128xbf16>
    %cst = arith.constant dense<0.000000e+00> : vector<64x128xf32>
    %8 = tpu.matmul %5, %7, %cst {dimension_numbers = #tpu.dot_dimension_numbers<[1], [0], [0], [1], [0, 0, 1, 1], [], []>} : vector<64x128xbf16>, vector<128x128xbf16>, vector<64x128xf32> -> vector<64x128xf32>
    %9 = arith.truncf %8 : vector<64x128xf32> to vector<64x128xbf16>
    %cst_10 = arith.constant dense<0.000000e+00> : vector<64x128xf32>
    %10 = tpu.matmul %0, %9, %cst_10 {dimension_numbers = #tpu.dot_dimension_numbers<[1], [0], [0], [1], [0, 0, 1, 1], [], []>} : vector<64x64xbf16>, vector<64x128xbf16>, vector<64x128xf32> -> vector<64x128xf32>
    %cst_11 = arith.constant 0.000000e+00 : f32
    %11 = vector.broadcast %cst_11 : f32 to vector<64x128xf32>
    %12 = arith.maximumf %10, %11 : vector<64x128xf32>
    %c0_12 = arith.constant 0 : index
    %c0_13 = arith.constant 0 : index
    %13 = vector.load %arg5[%c0_12, %c0_13] : memref<64x128xf32, #tpu.memory_space<vmem>>, vector<64x128xf32>
    tpu.vector_store %arg5[%c0_12, %c0_13], %12 {strides = array<i32>} : memref<64x128xf32, #tpu.memory_space<vmem>>, vector<64x128xf32>,
    %c0_14 = arith.constant 0 : index
    %c0_15 = arith.constant 0 : index
    %14 = vector.load %arg5[%c0_14, %c0_15] : memref<64x128xf32, #tpu.memory_space<vmem>>, vector<64x128xf32>
    %15 = arith.truncf %14 : vector<64x128xf32> to vector<64x128xbf16>
    %c1 = arith.constant 1 : index
    %c0_16 = arith.constant 0 : index
    %c0_17 = arith.constant 0 : index
    %16 = vector.load %arg2[%c1, %c0_16, %c0_17] : memref<3x128x128xbf16, #tpu.memory_space<vmem>>, vector<1x128x128xbf16>
    %17 = vector.shape_cast %16 : vector<1x128x128xbf16> to vector<128x128xbf16>
    %cst_18 = arith.constant dense<0.000000e+00> : vector<64x128xf32>
    %18 = tpu.matmul %15, %17, %cst_18 {dimension_numbers = #tpu.dot_dimension_numbers<[1], [0], [0], [1], [0, 0, 1, 1], [], []>} : vector<64x128xbf16>, vector<128x128xbf16>, vector<64x128xf32> -> vector<64x128xf32>
    %19 = arith.truncf %18 : vector<64x128xf32> to vector<64x128xbf16>
    %cst_19 = arith.constant dense<0.000000e+00> : vector<64x128xf32>
    %20 = tpu.matmul %0, %19, %cst_19 {dimension_numbers = #tpu.dot_dimension_numbers<[1], [0], [0], [1], [0, 0, 1, 1], [], []>} : vector<64x64xbf16>, vector<64x128xbf16>, vector<64x128xf32> -> vector<64x128xf32>
    %cst_20 = arith.constant 0.000000e+00 : f32
    %21 = vector.broadcast %cst_20 : f32 to vector<64x128xf32>
    %22 = arith.maximumf %20, %21 : vector<64x128xf32>
    %c0_21 = arith.constant 0 : index
    %c0_22 = arith.constant 0 : index
    %23 = vector.load %arg4[%c0_21, %c0_22] : memref<64x128xf32, #tpu.memory_space<vmem>>, vector<64x128xf32>
    tpu.vector_store %arg4[%c0_21, %c0_22], %22 {strides = array<i32>} : memref<64x128xf32, #tpu.memory_space<vmem>>, vector<64x128xf32>,
    %c0_23 = arith.constant 0 : index
    %c0_24 = arith.constant 0 : index
    %24 = vector.load %arg4[%c0_23, %c0_24] : memref<64x128xf32, #tpu.memory_space<vmem>>, vector<64x128xf32>
    %25 = arith.truncf %24 : vector<64x128xf32> to vector<64x128xbf16>
    %c2 = arith.constant 2 : index
    %c0_25 = arith.constant 0 : index
    %c0_26 = arith.constant 0 : index
    %26 = vector.load %arg2[%c2, %c0_25, %c0_26] : memref<3x128x128xbf16, #tpu.memory_space<vmem>>, vector<1x128x128xbf16>
    %27 = vector.shape_cast %26 : vector<1x128x128xbf16> to vector<128x128xbf16>
    %cst_27 = arith.constant dense<0.000000e+00> : vector<64x128xf32>
    %28 = tpu.matmul %25, %27, %cst_27 {dimension_numbers = #tpu.dot_dimension_numbers<[1], [0], [0], [1], [0, 0, 1, 1], [], []>} : vector<64x128xbf16>, vector<128x128xbf16>, vector<64x128xf32> -> vector<64x128xf32>
    %29 = arith.truncf %28 : vector<64x128xf32> to vector<64x128xbf16>
    %cst_28 = arith.constant dense<0.000000e+00> : vector<64x128xf32>
    %30 = tpu.matmul %0, %29, %cst_28 {dimension_numbers = #tpu.dot_dimension_numbers<[1], [0], [0], [1], [0, 0, 1, 1], [], []>} : vector<64x64xbf16>, vector<64x128xbf16>, vector<64x128xf32> -> vector<64x128xf32>
    %cst_29 = arith.constant 0.000000e+00 : f32
    %31 = vector.broadcast %cst_29 : f32 to vector<64x128xf32>
    %32 = arith.maximumf %30, %31 : vector<64x128xf32>
    %c0_30 = arith.constant 0 : index
    %c0_31 = arith.constant 0 : index
    %33 = vector.load %arg5[%c0_30, %c0_31] : memref<64x128xf32, #tpu.memory_space<vmem>>, vector<64x128xf32>
    tpu.vector_store %arg5[%c0_30, %c0_31], %32 {strides = array<i32>} : memref<64x128xf32, #tpu.memory_space<vmem>>, vector<64x128xf32>,
    %c0_32 = arith.constant 0 : index
    %c0_33 = arith.constant 0 : index
    %34 = vector.load %arg5[%c0_32, %c0_33] : memref<64x128xf32, #tpu.memory_space<vmem>>, vector<64x128xf32>
    %c0_34 = arith.constant 0 : index
    %c0_35 = arith.constant 0 : index
    %35 = vector.load %arg3[%c0_34, %c0_35] : memref<64x128xf32, #tpu.memory_space<vmem>>, vector<64x128xf32>
    tpu.vector_store %arg3[%c0_34, %c0_35], %34 {strides = array<i32>} : memref<64x128xf32, #tpu.memory_space<vmem>>, vector<64x128xf32>,
    return
  }
}

</mosaic_0001>

<llo_original>
// kernel: tpu_custom_call.1
$region0: #{tpu_custom_call.1}
  #allocation0 [shape = 'u32[]', space=smem, size = 0x4, offset = 0x4, fixed_abs, tag = 'smem constant byte address 0x4 - core index']
  #allocation1 [shape = 'u32[144,128]{1,0:T(1,128)}', space=vmem, size = 0x12000, scoped, tag = 'internal scratch']
  #allocation2 [shape = 'f32[64,128]{1,0:T(8,128)}', space=vmem, size = 0x8000, scoped, tag = 'scratch operand']
  #allocation3 [shape = 'f32[64,128]{1,0:T(8,128)}', space=vmem, size = 0x8000, scoped, tag = 'scratch operand']
  %s0 = inlined_call_operand.hbm [shape: bf16[64,64], index: 0, kind: input, shape index: {}]
  %s1 = inlined_call_operand.hbm [shape: bf16[64,128], index: 1, kind: input, shape index: {}]
  %s2 = inlined_call_operand.hbm [shape: bf16[3,128,128], index: 2, kind: input, shape index: {}]
  %s3 = inlined_call_operand.hbm [shape: f32[64,128], index: 3, kind: output, shape index: {}]
  %s4 = sld [smem:[#allocation0]]
  $region34: #{tpu_custom_call.1} parent=0
    _
  %s6 = ssub.s32 1, %s4
  %s7 = scalar_select 0, %s6, %s4
  $region1: #{tpu_custom_call.1} parent=0
    #allocation4 [shape = 'u8[16384]{0}', space=vmem, size = 0x4000, scoped, tag = 'input window, operand 0, single buffered']
    #allocation5 [shape = 's32[1]{0}', space=sflag, size = 0x4, scoped, tag = 'scoped memory for tpu_custom_call.1']
    #allocation6 [shape = 's32[1]{0}', space=sflag, size = 0x4, scoped, tag = 'scoped memory for tpu_custom_call.1']
    #allocation7 [shape = 'u8[16384]{0}', space=vmem, size = 0x4000, scoped, tag = 'input window, operand 1, single buffered']
    #allocation8 [shape = 's32[1]{0}', space=sflag, size = 0x4, scoped, tag = 'scoped memory for tpu_custom_call.1']
    #allocation9 [shape = 'u8[98304]{0}', space=vmem, size = 0x18000, scoped, tag = 'input window, operand 2, single buffered']
    #allocation10 [shape = 'u8[32768]{0}', space=vmem, size = 0x8000, scoped, tag = 'output window, operand 0, single buffered']
    %8 = vsyncpa [#allocation5], 0
    %9 = vsyncpa [#allocation8], 0
    %10 = vsyncpa [#allocation6], 0
    // Predicated region
    $region2: #{tpu_custom_call.1} parent=1 // pred_check
      _
    $region3: #{tpu_custom_call.1} parent=1 // pred_check_branch
      %12 = sbr.rel (0) target = $region5
    $region4: #{tpu_custom_call.1} parent=1 // pred_region
      %s14 = ssub.s32 512, 512
      %15 = vsyncadd [#allocation5], %s14
      %s16 = sshll.u32 [#allocation4], 4
      %s17 = int_to_ptr.vmem [resolvable:$true] %s16
      %22 = dma.hbm_to_vmem [thread:$0]  %s0, 512, %s17, [#allocation5], 64, 64, 4
    $region5: #{tpu_custom_call.1} parent=1 // pred_fallthru
      _
    // Predicated region
    $region6: #{tpu_custom_call.1} parent=1 // pred_check
      _
    $region7: #{tpu_custom_call.1} parent=1 // pred_check_branch
      %24 = sbr.rel (0) target = $region9
    $region8: #{tpu_custom_call.1} parent=1 // pred_region
      %s26 = ssub.s32 512, 512
      %27 = vsyncadd [#allocation8], %s26
      %s28 = sshll.u32 [#allocation7], 4
      %s29 = int_to_ptr.vmem [resolvable:$true] %s28
      %34 = dma.hbm_to_vmem [thread:$0]  %s1, 512, %s29, [#allocation8], 64, 64, 4
    $region9: #{tpu_custom_call.1} parent=1 // pred_fallthru
      _
    // Predicated region
    $region10: #{tpu_custom_call.1} parent=1 // pred_check
      _
    $region11: #{tpu_custom_call.1} parent=1 // pred_check_branch
      %36 = sbr.rel (0) target = $region13
    $region12: #{tpu_custom_call.1} parent=1 // pred_region
      %s38 = ssub.s32 3072, 3072
      %39 = vsyncadd [#allocation8], %s38
      %s40 = sshll.u32 [#allocation9], 4
      %s41 = int_to_ptr.vmem [resolvable:$true] %s40
      %46 = dma.hbm_to_vmem [thread:$0]  %s2, 3072, %s41, [#allocation8], 64, 64, 4
    $region13: #{tpu_custom_call.1} parent=1 // pred_fallthru
      _
    // Predicated region
    $region14: #{tpu_custom_call.1} parent=1 // pred_check
      _
    $region15: #{tpu_custom_call.1} parent=1 // pred_check_branch
      %48 = sbr.rel (0) target = $region17
    $region16: #{tpu_custom_call.1} parent=1 // pred_region
      %49 = dma.done [#allocation5], 512
    $region17: #{tpu_custom_call.1} parent=1 // pred_fallthru
      _
    // Predicated region
    $region18: #{tpu_custom_call.1} parent=1 // pred_check
      _
    $region19: #{tpu_custom_call.1} parent=1 // pred_check_branch
      %51 = sbr.rel (0) target = $region21
    $region20: #{tpu_custom_call.1} parent=1 // pred_region
      %52 = dma.done [#allocation8], 512
    $region21: #{tpu_custom_call.1} parent=1 // pred_fallthru
      _
    // Predicated region
    $region22: #{tpu_custom_call.1} parent=1 // pred_check
      _
    $region23: #{tpu_custom_call.1} parent=1 // pred_check_branch
      %54 = sbr.rel (0) target = $region25
    $region24: #{tpu_custom_call.1} parent=1 // pred_region
      %55 = dma.done [#allocation8], 3072
    $region25: #{tpu_custom_call.1} parent=1 // pred_fallthru
      _
    %v57 = vld [vmem:[#allocation4] sm:$0xf]
    %v58 = vld [vmem:[#allocation4 + $0x4] sm:$0xf]
    %v59 = vld [vmem:[#allocation4 + $0x8] sm:$0xf]
    %v60 = vld [vmem:[#allocation4 + $0xc] sm:$0xf]
    %v61 = vld [vmem:[#allocation4 + $0x10] sm:$0xf]
    %v62 = vld [vmem:[#allocation4 + $0x14] sm:$0xf]
    %v63 = vld [vmem:[#allocation4 + $0x18] sm:$0xf]
    %v64 = vld [vmem:[#allocation4 + $0x1c] sm:$0xf]
    %v65 = vld [vmem:[#allocation7] sm:$0xf]
    %v66 = vld [vmem:[#allocation7 + $0x4] sm:$0xf]
    %v67 = vld [vmem:[#allocation7 + $0x8] sm:$0xf]
    %v68 = vld [vmem:[#allocation7 + $0xc] sm:$0xf]
    %v69 = vld [vmem:[#allocation7 + $0x10] sm:$0xf]
    %v70 = vld [vmem:[#allocation7 + $0x14] sm:$0xf]
    %v71 = vld [vmem:[#allocation7 + $0x18] sm:$0xf]
    %v72 = vld [vmem:[#allocation7 + $0x1c] sm:$0xf]
    %v73 = vunpack.c.l.bf16 %v65
    %v74 = vunpack.c.l.bf16 %v66
    %v75 = vunpack.c.l.bf16 %v67
    %v76 = vunpack.c.l.bf16 %v68
    %v77 = vunpack.c.l.bf16 %v69
    %v78 = vunpack.c.l.bf16 %v70
    %v79 = vunpack.c.l.bf16 %v71
    %v80 = vunpack.c.l.bf16 %v72
    %81 = vst [vmem:[#allocation2] sm:$0xff] %v73
    %82 = vst [vmem:[#allocation2 + $0x8] sm:$0xff] %v74
    %83 = vst [vmem:[#allocation2 + $0x10] sm:$0xff] %v75
    %84 = vst [vmem:[#allocation2 + $0x18] sm:$0xff] %v76
    %85 = vst [vmem:[#allocation2 + $0x20] sm:$0xff] %v77
    %86 = vst [vmem:[#allocation2 + $0x28] sm:$0xff] %v78
    %87 = vst [vmem:[#allocation2 + $0x30] sm:$0xff] %v79
    %88 = vst [vmem:[#allocation2 + $0x38] sm:$0xff] %v80
    %v89 = vld [vmem:[#allocation2] sm:$0xff]
    %v90 = vld [vmem:[#allocation2 + $0x8] sm:$0xff]
    %v91 = vld [vmem:[#allocation2 + $0x10] sm:$0xff]
    %v92 = vld [vmem:[#allocation2 + $0x18] sm:$0xff]
    %v93 = vld [vmem:[#allocation2 + $0x20] sm:$0xff]
    %v94 = vld [vmem:[#allocation2 + $0x28] sm:$0xff]
    %v95 = vld [vmem:[#allocation2 + $0x30] sm:$0xff]
    %v96 = vld [vmem:[#allocation2 + $0x38] sm:$0xff]
    %v97 = vpack.c.bf16 %v90, %v89
    %v98 = vpack.c.bf16 %v92, %v91
    %v99 = vpack.c.bf16 %v94, %v93
    %v100 = vpack.c.bf16 %v96, %v95
    %v101 = vld [vmem:[#allocation9] sm:$0xf]
    %v102 = vld [vmem:[#allocation9 + $0x4] sm:$0xf]
    %v103 = vld [vmem:[#allocation9 + $0x8] sm:$0xf]
    %v104 = vld [vmem:[#allocation9 + $0xc] sm:$0xf]
    %v105 = vld [vmem:[#allocation9 + $0x10] sm:$0xf]
    %v106 = vld [vmem:[#allocation9 + $0x14] sm:$0xf]
    %v107 = vld [vmem:[#allocation9 + $0x18] sm:$0xf]
    %v108 = vld [vmem:[#allocation9 + $0x1c] sm:$0xf]
    %v109 = vld [vmem:[#allocation9 + $0x20] sm:$0xf]
    %v110 = vld [vmem:[#allocation9 + $0x24] sm:$0xf]
    %v111 = vld [vmem:[#allocation9 + $0x28] sm:$0xf]
    %v112 = vld [vmem:[#allocation9 + $0x2c] sm:$0xf]
    %v113 = vld [vmem:[#allocation9 + $0x30] sm:$0xf]
    %v114 = vld [vmem:[#allocation9 + $0x34] sm:$0xf]
    %v115 = vld [vmem:[#allocation9 + $0x38] sm:$0xf]
    %v116 = vld [vmem:[#allocation9 + $0x3c] sm:$0xf]
    %v133 = vunpack.c.l.b16 %v101
    %v134 = vunpack.c.l.b16 %v102
    %v135 = vunpack.c.l.b16 %v103
    %v136 = vunpack.c.l.b16 %v104
    %v137 = vunpack.c.l.b16 %v105
    %v138 = vunpack.c.l.b16 %v106
    %v139 = vunpack.c.l.b16 %v107
    %v140 = vunpack.c.l.b16 %v108
    %v141 = vunpack.c.l.b16 %v109
    %v142 = vunpack.c.l.b16 %v110
    %v143 = vunpack.c.l.b16 %v111
    %v144 = vunpack.c.l.b16 %v112
    %v145 = vunpack.c.l.b16 %v113
    %v146 = vunpack.c.l.b16 %v114
    %v147 = vunpack.c.l.b16 %v115
    %v148 = vunpack.c.l.b16 %v116
    %v149 = vpack.c.b16 %v134, %v133
    %v150 = vpack.c.b16 %v136, %v135
    %v151 = vpack.c.b16 %v138, %v137
    %v152 = vpack.c.b16 %v140, %v139
    %v153 = vpack.c.b16 %v142, %v141
    %v154 = vpack.c.b16 %v144, %v143
    %v155 = vpack.c.b16 %v146, %v145
    %v156 = vpack.c.b16 %v148, %v147
    %165 = vmatprep.subr.bf16.mxu0 0
    %166 = vmatpush1.bf16.msra.mxu0 %v156
    %167 = vmatprep.subr.bf16.mxu0 0
    %168 = vmatpush1.bf16.msra.mxu0 %v155
    %169 = vmatprep.subr.bf16.mxu0 0
    %170 = vmatpush1.bf16.msra.mxu0 %v154
    %171 = vmatprep.subr.bf16.mxu0 0
    %172 = vmatpush1.bf16.msra.mxu0 %v153
    %173 = vmatprep.subr.bf16.mxu0 0
    %174 = vmatpush1.bf16.msra.mxu0 %v152
    %175 = vmatprep.subr.bf16.mxu0 0
    %176 = vmatpush1.bf16.msra.mxu0 %v151
    %177 = vmatprep.subr.bf16.mxu0 0
    %178 = vmatpush1.bf16.msra.mxu0 %v150
    %179 = vmatprep.subr.bf16.mxu0 0
    %180 = vmatpush1.bf16.msra.mxu0 %v149
    %181 = vmatprep.subr.bf16.mxu0 0
    %182 = vmatpush2.bf16.msra.mxu0 0
    %183 = vmatprep.subr.bf16.mxu0 0
    %184 = vmatpush2.bf16.msra.mxu0 0
    %185 = vmatprep.subr.bf16.mxu0 0
    %186 = vmatpush2.bf16.msra.mxu0 0
    %187 = vmatprep.subr.bf16.mxu0 0
    %188 = vmatpush2.bf16.msra.mxu0 0
    %189 = vmatprep.subr.bf16.mxu0 0
    %190 = vmatpush2.bf16.msra.mxu0 0
    %191 = vmatprep.subr.bf16.mxu0 0
    %192 = vmatpush2.bf16.msra.mxu0 0
    %193 = vmatprep.subr.bf16.mxu0 0
    %194 = vmatpush2.bf16.msra.mxu0 0
    %195 = vmatprep.subr.bf16.mxu0 0
    %196 = vmatpush2.bf16.msra.mxu0 0
    %197 = vmatprep.mubr.bf16.mxu0 0
    %198 = vmatmul.mubr.bf16.gmra.mxu0 %v97
    %v199 = vpop.f32.mrf.mxu0
    %v200 = vadd.f32 0.0, %v199
    %v201 = vpop.f32.mrf.mxu0
    %v202 = vpop.f32.mrf.mxu0
    %v203 = vadd.f32 0.0, %v202
    %v204 = vpop.f32.mrf.mxu0
    %205 = vmatprep.mubr.bf16.mxu0 0
    %206 = vmatmul.mubr.bf16.gmra.mxu0 %v98
    %v207 = vpop.f32.mrf.mxu0
    %v208 = vadd.f32 0.0, %v207
    %v209 = vpop.f32.mrf.mxu0
    %v210 = vpop.f32.mrf.mxu0
    %v211 = vadd.f32 0.0, %v210
    %v212 = vpop.f32.mrf.mxu0
    %213 = vmatprep.mubr.bf16.mxu0 0
    %214 = vmatmul.mubr.bf16.gmra.mxu0 %v99
    %v215 = vpop.f32.mrf.mxu0
    %v216 = vadd.f32 0.0, %v215
    %v217 = vpop.f32.mrf.mxu0
    %v218 = vpop.f32.mrf.mxu0
    %v219 = vadd.f32 0.0, %v218
    %v220 = vpop.f32.mrf.mxu0
    %221 = vmatprep.mubr.bf16.mxu0 0
    %222 = vmatmul.mubr.bf16.gmra.mxu0 %v100
    %v223 = vpop.f32.mrf.mxu0
    %v224 = vadd.f32 0.0, %v223
    %v225 = vpop.f32.mrf.mxu0
    %v226 = vpop.f32.mrf.mxu0
    %v227 = vadd.f32 0.0, %v226
    %v228 = vpop.f32.mrf.mxu0
    %229 = vdwg.mxu0
    %v230 = vpack.c.bf16 %v203, %v200
    %v231 = vpack.c.bf16 %v211, %v208
    %v232 = vpack.c.bf16 %v219, %v216
    %v233 = vpack.c.bf16 %v227, %v224
    %v242 = vunpack.c.l.b16 %v57
    %v243 = vunpack.c.l.b16 %v58
    %v244 = vunpack.c.l.b16 %v59
    %v245 = vunpack.c.l.b16 %v60
    %v246 = vunpack.c.l.b16 %v61
    %v247 = vunpack.c.l.b16 %v62
    %v248 = vunpack.c.l.b16 %v63
    %v249 = vunpack.c.l.b16 %v64
    %v250 = vpack.c.b16 %v243, %v242
    %v251 = vpack.c.b16 %v245, %v244
    %v252 = vpack.c.b16 %v247, %v246
    %v253 = vpack.c.b16 %v249, %v248
    %vm254 = vcmask 523264
    %v256 = vsel %vm254, %v250, 0
    %v259 = vsel %vm254, %v251, 0
    %v262 = vsel %vm254, %v252, 0
    %v265 = vsel %vm254, %v253, 0
    %267 = vmatprep.subr.bf16.mxu0 0
    %268 = vmatpush1.bf16.msra.mxu0 0
    %269 = vmatprep.subr.bf16.mxu0 0
    %270 = vmatpush1.bf16.msra.mxu0 0
    %271 = vmatprep.subr.bf16.mxu0 0
    %272 = vmatpush1.bf16.msra.mxu0 0
    %273 = vmatprep.subr.bf16.mxu0 0
    %274 = vmatpush1.bf16.msra.mxu0 0
    %275 = vmatprep.subr.bf16.mxu0 0
    %276 = vmatpush1.bf16.msra.mxu0 %v233
    %277 = vmatprep.subr.bf16.mxu0 0
    %278 = vmatpush1.bf16.msra.mxu0 %v232
    %279 = vmatprep.subr.bf16.mxu0 0
    %280 = vmatpush1.bf16.msra.mxu0 %v231
    %281 = vmatprep.subr.bf16.mxu0 0
    %282 = vmatpush1.bf16.msra.mxu0 %v230
    %283 = vmatprep.subr.bf16.mxu0 0
    %284 = vmatpush2.bf16.msra.mxu0 0
    %285 = vmatprep.subr.bf16.mxu0 0
    %286 = vmatpush2.bf16.msra.mxu0 0
    %287 = vmatprep.subr.bf16.mxu0 0
    %288 = vmatpush2.bf16.msra.mxu0 0
    %289 = vmatprep.subr.bf16.mxu0 0
    %290 = vmatpush2.bf16.msra.mxu0 0
    %291 = vmatprep.subr.bf16.mxu0 0
    %292 = vmatpush2.bf16.msra.mxu0 0
    %293 = vmatprep.subr.bf16.mxu0 0
    %294 = vmatpush2.bf16.msra.mxu0 0
    %295 = vmatprep.subr.bf16.mxu0 0
    %296 = vmatpush2.bf16.msra.mxu0 0
    %297 = vmatprep.subr.bf16.mxu0 0
    %298 = vmatpush2.bf16.msra.mxu0 0
    %299 = vmatprep.mubr.bf16.mxu0 0
    %300 = vmatmul.mubr.bf16.gmra.mxu0 %v256
    %v301 = vpop.f32.mrf.mxu0
    %v302 = vadd.f32 0.0, %v301
    %v303 = vpop.f32.mrf.mxu0
    %v304 = vpop.f32.mrf.mxu0
    %v305 = vadd.f32 0.0, %v304
    %v306 = vpop.f32.mrf.mxu0
    %307 = vmatprep.mubr.bf16.mxu0 0
    %308 = vmatmul.mubr.bf16.gmra.mxu0 %v259
    %v309 = vpop.f32.mrf.mxu0
    %v310 = vadd.f32 0.0, %v309
    %v311 = vpop.f32.mrf.mxu0
    %v312 = vpop.f32.mrf.mxu0
    %v313 = vadd.f32 0.0, %v312
    %v314 = vpop.f32.mrf.mxu0
    %315 = vmatprep.mubr.bf16.mxu0 0
    %316 = vmatmul.mubr.bf16.gmra.mxu0 %v262
    %v317 = vpop.f32.mrf.mxu0
    %v318 = vadd.f32 0.0, %v317
    %v319 = vpop.f32.mrf.mxu0
    %v320 = vpop.f32.mrf.mxu0
    %v321 = vadd.f32 0.0, %v320
    %v322 = vpop.f32.mrf.mxu0
    %323 = vmatprep.mubr.bf16.mxu0 0
    %324 = vmatmul.mubr.bf16.gmra.mxu0 %v265
    %v325 = vpop.f32.mrf.mxu0
    %v326 = vadd.f32 0.0, %v325
    %v327 = vpop.f32.mrf.mxu0
    %v328 = vpop.f32.mrf.mxu0
    %v329 = vadd.f32 0.0, %v328
    %v330 = vpop.f32.mrf.mxu0
    %331 = vdwg.mxu0
    %v332 = vmax.f32 %v302, 0.0
    %v333 = vmax.f32 %v305, 0.0
    %v334 = vmax.f32 %v310, 0.0
    %v335 = vmax.f32 %v313, 0.0
    %v336 = vmax.f32 %v318, 0.0
    %v337 = vmax.f32 %v321, 0.0
    %v338 = vmax.f32 %v326, 0.0
    %v339 = vmax.f32 %v329, 0.0
    %340 = vst [vmem:[#allocation3] sm:$0xff] %v332
    %341 = vst [vmem:[#allocation3 + $0x8] sm:$0xff] %v333
    %342 = vst [vmem:[#allocation3 + $0x10] sm:$0xff] %v334
    %343 = vst [vmem:[#allocation3 + $0x18] sm:$0xff] %v335
    %344 = vst [vmem:[#allocation3 + $0x20] sm:$0xff] %v336
    %345 = vst [vmem:[#allocation3 + $0x28] sm:$0xff] %v337
    %346 = vst [vmem:[#allocation3 + $0x30] sm:$0xff] %v338
    %347 = vst [vmem:[#allocation3 + $0x38] sm:$0xff] %v339
    %v348 = vld [vmem:[#allocation3] sm:$0xff]
    %v349 = vld [vmem:[#allocation3 + $0x8] sm:$0xff]
    %v350 = vld [vmem:[#allocation3 + $0x10] sm:$0xff]
    %v351 = vld [vmem:[#allocation3 + $0x18] sm:$0xff]
    %v352 = vld [vmem:[#allocation3 + $0x20] sm:$0xff]
    %v353 = vld [vmem:[#allocation3 + $0x28] sm:$0xff]
    %v354 = vld [vmem:[#allocation3 + $0x30] sm:$0xff]
    %v355 = vld [vmem:[#allocation3 + $0x38] sm:$0xff]
    %v356 = vpack.c.bf16 %v349, %v348
    %v357 = vpack.c.bf16 %v351, %v350
    %v358 = vpack.c.bf16 %v353, %v352
    %v359 = vpack.c.bf16 %v355, %v354
    %s360 = scalar_lea.vmem [#allocation9], 64
    %v361 = vld [vmem:[%s360] sm:$0xf]
    %v362 = vld [vmem:[%s360 + $0x4] sm:$0xf]
    %v363 = vld [vmem:[%s360 + $0x8] sm:$0xf]
    %v364 = vld [vmem:[%s360 + $0xc] sm:$0xf]
    %v365 = vld [vmem:[%s360 + $0x10] sm:$0xf]
    %v366 = vld [vmem:[%s360 + $0x14] sm:$0xf]
    %v367 = vld [vmem:[%s360 + $0x18] sm:$0xf]
    %v368 = vld [vmem:[%s360 + $0x1c] sm:$0xf]
    %v369 = vld [vmem:[%s360 + $0x20] sm:$0xf]
    %v370 = vld [vmem:[%s360 + $0x24] sm:$0xf]
    %v371 = vld [vmem:[%s360 + $0x28] sm:$0xf]
    %v372 = vld [vmem:[%s360 + $0x2c] sm:$0xf]
    %v373 = vld [vmem:[%s360 + $0x30] sm:$0xf]
    %v374 = vld [vmem:[%s360 + $0x34] sm:$0xf]
    %v375 = vld [vmem:[%s360 + $0x38] sm:$0xf]
    %v376 = vld [vmem:[%s360 + $0x3c] sm:$0xf]
    %v393 = vunpack.c.l.b16 %v361
    %v394 = vunpack.c.l.b16 %v362
    %v395 = vunpack.c.l.b16 %v363
    %v396 = vunpack.c.l.b16 %v364
    %v397 = vunpack.c.l.b16 %v365
    %v398 = vunpack.c.l.b16 %v366
    %v399 = vunpack.c.l.b16 %v367
    %v400 = vunpack.c.l.b16 %v368
    %v401 = vunpack.c.l.b16 %v369
    %v402 = vunpack.c.l.b16 %v370
    %v403 = vunpack.c.l.b16 %v371
    %v404 = vunpack.c.l.b16 %v372
    %v405 = vunpack.c.l.b16 %v373
    %v406 = vunpack.c.l.b16 %v374
    %v407 = vunpack.c.l.b16 %v375
    %v408 = vunpack.c.l.b16 %v376
    %v409 = vpack.c.b16 %v394, %v393
    %v410 = vpack.c.b16 %v396, %v395
    %v411 = vpack.c.b16 %v398, %v397
    %v412 = vpack.c.b16 %v400, %v399
    %v413 = vpack.c.b16 %v402, %v401
    %v414 = vpack.c.b16 %v404, %v403
    %v415 = vpack.c.b16 %v406, %v405
    %v416 = vpack.c.b16 %v408, %v407
    %425 = vmatprep.subr.bf16.mxu0 0
    %426 = vmatpush1.bf16.msra.mxu0 %v416
    %427 = vmatprep.subr.bf16.mxu0 0
    %428 = vmatpush1.bf16.msra.mxu0 %v415
    %429 = vmatprep.subr.bf16.mxu0 0
    %430 = vmatpush1.bf16.msra.mxu0 %v414
    %431 = vmatprep.subr.bf16.mxu0 0
    %432 = vmatpush1.bf16.msra.mxu0 %v413
    %433 = vmatprep.subr.bf16.mxu0 0
    %434 = vmatpush1.bf16.msra.mxu0 %v412
    %435 = vmatprep.subr.bf16.mxu0 0
    %436 = vmatpush1.bf16.msra.mxu0 %v411
    %437 = vmatprep.subr.bf16.mxu0 0
    %438 = vmatpush1.bf16.msra.mxu0 %v410
    %439 = vmatprep.subr.bf16.mxu0 0
    %440 = vmatpush1.bf16.msra.mxu0 %v409
    %441 = vmatprep.subr.bf16.mxu0 0
    %442 = vmatpush2.bf16.msra.mxu0 0
    %443 = vmatprep.subr.bf16.mxu0 0
    %444 = vmatpush2.bf16.msra.mxu0 0
    %445 = vmatprep.subr.bf16.mxu0 0
    %446 = vmatpush2.bf16.msra.mxu0 0
    %447 = vmatprep.subr.bf16.mxu0 0
    %448 = vmatpush2.bf16.msra.mxu0 0
    %449 = vmatprep.subr.bf16.mxu0 0
    %450 = vmatpush2.bf16.msra.mxu0 0
    %451 = vmatprep.subr.bf16.mxu0 0
    %452 = vmatpush2.bf16.msra.mxu0 0
    %453 = vmatprep.subr.bf16.mxu0 0
    %454 = vmatpush2.bf16.msra.mxu0 0
    %455 = vmatprep.subr.bf16.mxu0 0
    %456 = vmatpush2.bf16.msra.mxu0 0
    %457 = vmatprep.mubr.bf16.mxu0 0
    %458 = vmatmul.mubr.bf16.gmra.mxu0 %v356
    %v459 = vpop.f32.mrf.mxu0
    %v460 = vadd.f32 0.0, %v459
    %v461 = vpop.f32.mrf.mxu0
    %v462 = vpop.f32.mrf.mxu0
    %v463 = vadd.f32 0.0, %v462
    %v464 = vpop.f32.mrf.mxu0
    %465 = vmatprep.mubr.bf16.mxu0 0
    %466 = vmatmul.mubr.bf16.gmra.mxu0 %v357
    %v467 = vpop.f32.mrf.mxu0
    %v468 = vadd.f32 0.0, %v467
    %v469 = vpop.f32.mrf.mxu0
    %v470 = vpop.f32.mrf.mxu0
    %v471 = vadd.f32 0.0, %v470
    %v472 = vpop.f32.mrf.mxu0
    %473 = vmatprep.mubr.bf16.mxu0 0
    %474 = vmatmul.mubr.bf16.gmra.mxu0 %v358
    %v475 = vpop.f32.mrf.mxu0
    %v476 = vadd.f32 0.0, %v475
    %v477 = vpop.f32.mrf.mxu0
    %v478 = vpop.f32.mrf.mxu0
    %v479 = vadd.f32 0.0, %v478
    %v480 = vpop.f32.mrf.mxu0
    %481 = vmatprep.mubr.bf16.mxu0 0
    %482 = vmatmul.mubr.bf16.gmra.mxu0 %v359
    %v483 = vpop.f32.mrf.mxu0
    %v484 = vadd.f32 0.0, %v483
    %v485 = vpop.f32.mrf.mxu0
    %v486 = vpop.f32.mrf.mxu0
    %v487 = vadd.f32 0.0, %v486
    %v488 = vpop.f32.mrf.mxu0
    %489 = vdwg.mxu0
    %v490 = vpack.c.bf16 %v463, %v460
    %v491 = vpack.c.bf16 %v471, %v468
    %v492 = vpack.c.bf16 %v479, %v476
    %v493 = vpack.c.bf16 %v487, %v484
    %494 = vmatprep.subr.bf16.mxu0 0
    %495 = vmatpush1.bf16.msra.mxu0 0
    %496 = vmatprep.subr.bf16.mxu0 0
    %497 = vmatpush1.bf16.msra.mxu0 0
    %498 = vmatprep.subr.bf16.mxu0 0
    %499 = vmatpush1.bf16.msra.mxu0 0
    %500 = vmatprep.subr.bf16.mxu0 0
    %501 = vmatpush1.bf16.msra.mxu0 0
    %502 = vmatprep.subr.bf16.mxu0 0
    %503 = vmatpush1.bf16.msra.mxu0 %v493
    %504 = vmatprep.subr.bf16.mxu0 0
    %505 = vmatpush1.bf16.msra.mxu0 %v492
    %506 = vmatprep.subr.bf16.mxu0 0
    %507 = vmatpush1.bf16.msra.mxu0 %v491
    %508 = vmatprep.subr.bf16.mxu0 0
    %509 = vmatpush1.bf16.msra.mxu0 %v490
    %510 = vmatprep.subr.bf16.mxu0 0
    %511 = vmatpush2.bf16.msra.mxu0 0
    %512 = vmatprep.subr.bf16.mxu0 0
    %513 = vmatpush2.bf16.msra.mxu0 0
    %514 = vmatprep.subr.bf16.mxu0 0
    %515 = vmatpush2.bf16.msra.mxu0 0
    %516 = vmatprep.subr.bf16.mxu0 0
    %517 = vmatpush2.bf16.msra.mxu0 0
    %518 = vmatprep.subr.bf16.mxu0 0
    %519 = vmatpush2.bf16.msra.mxu0 0
    %520 = vmatprep.subr.bf16.mxu0 0
    %521 = vmatpush2.bf16.msra.mxu0 0
    %522 = vmatprep.subr.bf16.mxu0 0
    %523 = vmatpush2.bf16.msra.mxu0 0
    %524 = vmatprep.subr.bf16.mxu0 0
    %525 = vmatpush2.bf16.msra.mxu0 0
    %526 = vmatprep.mubr.bf16.mxu0 0
    %527 = vmatmul.mubr.bf16.gmra.mxu0 %v256
    %v528 = vpop.f32.mrf.mxu0
    %v529 = vadd.f32 0.0, %v528
    %v530 = vpop.f32.mrf.mxu0
    %v531 = vpop.f32.mrf.mxu0
    %v532 = vadd.f32 0.0, %v531
    %v533 = vpop.f32.mrf.mxu0
    %534 = vmatprep.mubr.bf16.mxu0 0
    %535 = vmatmul.mubr.bf16.gmra.mxu0 %v259
    %v536 = vpop.f32.mrf.mxu0
    %v537 = vadd.f32 0.0, %v536
    %v538 = vpop.f32.mrf.mxu0
    %v539 = vpop.f32.mrf.mxu0
    %v540 = vadd.f32 0.0, %v539
    %v541 = vpop.f32.mrf.mxu0
    %542 = vmatprep.mubr.bf16.mxu0 0
    %543 = vmatmul.mubr.bf16.gmra.mxu0 %v262
    %v544 = vpop.f32.mrf.mxu0
    %v545 = vadd.f32 0.0, %v544
    %v546 = vpop.f32.mrf.mxu0
    %v547 = vpop.f32.mrf.mxu0
    %v548 = vadd.f32 0.0, %v547
    %v549 = vpop.f32.mrf.mxu0
    %550 = vmatprep.mubr.bf16.mxu0 0
    %551 = vmatmul.mubr.bf16.gmra.mxu0 %v265
    %v552 = vpop.f32.mrf.mxu0
    %v553 = vadd.f32 0.0, %v552
    %v554 = vpop.f32.mrf.mxu0
    %v555 = vpop.f32.mrf.mxu0
    %v556 = vadd.f32 0.0, %v555
    %v557 = vpop.f32.mrf.mxu0
    %558 = vdwg.mxu0
    %v559 = vmax.f32 %v529, 0.0
    %v560 = vmax.f32 %v532, 0.0
    %v561 = vmax.f32 %v537, 0.0
    %v562 = vmax.f32 %v540, 0.0
    %v563 = vmax.f32 %v545, 0.0
    %v564 = vmax.f32 %v548, 0.0
    %v565 = vmax.f32 %v553, 0.0
    %v566 = vmax.f32 %v556, 0.0
    %567 = vst [vmem:[#allocation2] sm:$0xff] %v559
    %568 = vst [vmem:[#allocation2 + $0x8] sm:$0xff] %v560
    %569 = vst [vmem:[#allocation2 + $0x10] sm:$0xff] %v561
    %570 = vst [vmem:[#allocation2 + $0x18] sm:$0xff] %v562
    %571 = vst [vmem:[#allocation2 + $0x20] sm:$0xff] %v563
    %572 = vst [vmem:[#allocation2 + $0x28] sm:$0xff] %v564
    %573 = vst [vmem:[#allocation2 + $0x30] sm:$0xff] %v565
    %574 = vst [vmem:[#allocation2 + $0x38] sm:$0xff] %v566
    %v575 = vld [vmem:[#allocation2] sm:$0xff]
    %v576 = vld [vmem:[#allocation2 + $0x8] sm:$0xff]
    %v577 = vld [vmem:[#allocation2 + $0x10] sm:$0xff]
    %v578 = vld [vmem:[#allocation2 + $0x18] sm:$0xff]
    %v579 = vld [vmem:[#allocation2 + $0x20] sm:$0xff]
    %v580 = vld [vmem:[#allocation2 + $0x28] sm:$0xff]
    %v581 = vld [vmem:[#allocation2 + $0x30] sm:$0xff]
    %v582 = vld [vmem:[#allocation2 + $0x38] sm:$0xff]
    %v583 = vpack.c.bf16 %v576, %v575
    %v584 = vpack.c.bf16 %v578, %v577
    %v585 = vpack.c.bf16 %v580, %v579
    %v586 = vpack.c.bf16 %v582, %v581
    %s587 = scalar_lea.vmem [#allocation9], 128
    %v588 = vld [vmem:[%s587] sm:$0xf]
    %v589 = vld [vmem:[%s587 + $0x4] sm:$0xf]
    %v590 = vld [vmem:[%s587 + $0x8] sm:$0xf]
    %v591 = vld [vmem:[%s587 + $0xc] sm:$0xf]
    %v592 = vld [vmem:[%s587 + $0x10] sm:$0xf]
    %v593 = vld [vmem:[%s587 + $0x14] sm:$0xf]
    %v594 = vld [vmem:[%s587 + $0x18] sm:$0xf]
    %v595 = vld [vmem:[%s587 + $0x1c] sm:$0xf]
    %v596 = vld [vmem:[%s587 + $0x20] sm:$0xf]
    %v597 = vld [vmem:[%s587 + $0x24] sm:$0xf]
    %v598 = vld [vmem:[%s587 + $0x28] sm:$0xf]
    %v599 = vld [vmem:[%s587 + $0x2c] sm:$0xf]
    %v600 = vld [vmem:[%s587 + $0x30] sm:$0xf]
    %v601 = vld [vmem:[%s587 + $0x34] sm:$0xf]
    %v602 = vld [vmem:[%s587 + $0x38] sm:$0xf]
    %v603 = vld [vmem:[%s587 + $0x3c] sm:$0xf]
    %v620 = vunpack.c.l.b16 %v588
    %v621 = vunpack.c.l.b16 %v589
    %v622 = vunpack.c.l.b16 %v590
    %v623 = vunpack.c.l.b16 %v591
    %v624 = vunpack.c.l.b16 %v592
    %v625 = vunpack.c.l.b16 %v593
    %v626 = vunpack.c.l.b16 %v594
    %v627 = vunpack.c.l.b16 %v595
    %v628 = vunpack.c.l.b16 %v596
    %v629 = vunpack.c.l.b16 %v597
    %v630 = vunpack.c.l.b16 %v598
    %v631 = vunpack.c.l.b16 %v599
    %v632 = vunpack.c.l.b16 %v600
    %v633 = vunpack.c.l.b16 %v601
    %v634 = vunpack.c.l.b16 %v602
    %v635 = vunpack.c.l.b16 %v603
    %v636 = vpack.c.b16 %v621, %v620
    %v637 = vpack.c.b16 %v623, %v622
    %v638 = vpack.c.b16 %v625, %v624
    %v639 = vpack.c.b16 %v627, %v626
    %v640 = vpack.c.b16 %v629, %v628
    %v641 = vpack.c.b16 %v631, %v630
    %v642 = vpack.c.b16 %v633, %v632
    %v643 = vpack.c.b16 %v635, %v634
    %652 = vmatprep.subr.bf16.mxu0 0
    %653 = vmatpush1.bf16.msra.mxu0 %v643
    %654 = vmatprep.subr.bf16.mxu0 0
    %655 = vmatpush1.bf16.msra.mxu0 %v642
    %656 = vmatprep.subr.bf16.mxu0 0
    %657 = vmatpush1.bf16.msra.mxu0 %v641
    %658 = vmatprep.subr.bf16.mxu0 0
    %659 = vmatpush1.bf16.msra.mxu0 %v640
    %660 = vmatprep.subr.bf16.mxu0 0
    %661 = vmatpush1.bf16.msra.mxu0 %v639
    %662 = vmatprep.subr.bf16.mxu0 0
    %663 = vmatpush1.bf16.msra.mxu0 %v638
    %664 = vmatprep.subr.bf16.mxu0 0
    %665 = vmatpush1.bf16.msra.mxu0 %v637
    %666 = vmatprep.subr.bf16.mxu0 0
    %667 = vmatpush1.bf16.msra.mxu0 %v636
    %668 = vmatprep.subr.bf16.mxu0 0
    %669 = vmatpush2.bf16.msra.mxu0 0
    %670 = vmatprep.subr.bf16.mxu0 0
    %671 = vmatpush2.bf16.msra.mxu0 0
    %672 = vmatprep.subr.bf16.mxu0 0
    %673 = vmatpush2.bf16.msra.mxu0 0
    %674 = vmatprep.subr.bf16.mxu0 0
    %675 = vmatpush2.bf16.msra.mxu0 0
    %676 = vmatprep.subr.bf16.mxu0 0
    %677 = vmatpush2.bf16.msra.mxu0 0
    %678 = vmatprep.subr.bf16.mxu0 0
    %679 = vmatpush2.bf16.msra.mxu0 0
    %680 = vmatprep.subr.bf16.mxu0 0
    %681 = vmatpush2.bf16.msra.mxu0 0
    %682 = vmatprep.subr.bf16.mxu0 0
    %683 = vmatpush2.bf16.msra.mxu0 0
    %684 = vmatprep.mubr.bf16.mxu0 0
    %685 = vmatmul.mubr.bf16.gmra.mxu0 %v583
    %v686 = vpop.f32.mrf.mxu0
    %v687 = vadd.f32 0.0, %v686
    %v688 = vpop.f32.mrf.mxu0
    %v689 = vpop.f32.mrf.mxu0
    %v690 = vadd.f32 0.0, %v689
    %v691 = vpop.f32.mrf.mxu0
    %692 = vmatprep.mubr.bf16.mxu0 0
    %693 = vmatmul.mubr.bf16.gmra.mxu0 %v584
    %v694 = vpop.f32.mrf.mxu0
    %v695 = vadd.f32 0.0, %v694
    %v696 = vpop.f32.mrf.mxu0
    %v697 = vpop.f32.mrf.mxu0
    %v698 = vadd.f32 0.0, %v697
    %v699 = vpop.f32.mrf.mxu0
    %700 = vmatprep.mubr.bf16.mxu0 0
    %701 = vmatmul.mubr.bf16.gmra.mxu0 %v585
    %v702 = vpop.f32.mrf.mxu0
    %v703 = vadd.f32 0.0, %v702
    %v704 = vpop.f32.mrf.mxu0
    %v705 = vpop.f32.mrf.mxu0
    %v706 = vadd.f32 0.0, %v705
    %v707 = vpop.f32.mrf.mxu0
    %708 = vmatprep.mubr.bf16.mxu0 0
    %709 = vmatmul.mubr.bf16.gmra.mxu0 %v586
    %v710 = vpop.f32.mrf.mxu0
    %v711 = vadd.f32 0.0, %v710
    %v712 = vpop.f32.mrf.mxu0
    %v713 = vpop.f32.mrf.mxu0
    %v714 = vadd.f32 0.0, %v713
    %v715 = vpop.f32.mrf.mxu0
    %716 = vdwg.mxu0
    %v717 = vpack.c.bf16 %v690, %v687
    %v718 = vpack.c.bf16 %v698, %v695
    %v719 = vpack.c.bf16 %v706, %v703
    %v720 = vpack.c.bf16 %v714, %v711
    %721 = vmatprep.subr.bf16.mxu0 0
    %722 = vmatpush1.bf16.msra.mxu0 0
    %723 = vmatprep.subr.bf16.mxu0 0
    %724 = vmatpush1.bf16.msra.mxu0 0
    %725 = vmatprep.subr.bf16.mxu0 0
    %726 = vmatpush1.bf16.msra.mxu0 0
    %727 = vmatprep.subr.bf16.mxu0 0
    %728 = vmatpush1.bf16.msra.mxu0 0
    %729 = vmatprep.subr.bf16.mxu0 0
    %730 = vmatpush1.bf16.msra.mxu0 %v720
    %731 = vmatprep.subr.bf16.mxu0 0
    %732 = vmatpush1.bf16.msra.mxu0 %v719
    %733 = vmatprep.subr.bf16.mxu0 0
    %734 = vmatpush1.bf16.msra.mxu0 %v718
    %735 = vmatprep.subr.bf16.mxu0 0
    %736 = vmatpush1.bf16.msra.mxu0 %v717
    %737 = vmatprep.subr.bf16.mxu0 0
    %738 = vmatpush2.bf16.msra.mxu0 0
    %739 = vmatprep.subr.bf16.mxu0 0
    %740 = vmatpush2.bf16.msra.mxu0 0
    %741 = vmatprep.subr.bf16.mxu0 0
    %742 = vmatpush2.bf16.msra.mxu0 0
    %743 = vmatprep.subr.bf16.mxu0 0
    %744 = vmatpush2.bf16.msra.mxu0 0
    %745 = vmatprep.subr.bf16.mxu0 0
    %746 = vmatpush2.bf16.msra.mxu0 0
    %747 = vmatprep.subr.bf16.mxu0 0
    %748 = vmatpush2.bf16.msra.mxu0 0
    %749 = vmatprep.subr.bf16.mxu0 0
    %750 = vmatpush2.bf16.msra.mxu0 0
    %751 = vmatprep.subr.bf16.mxu0 0
    %752 = vmatpush2.bf16.msra.mxu0 0
    %753 = vmatprep.mubr.bf16.mxu0 0
    %754 = vmatmul.mubr.bf16.gmra.mxu0 %v256
    %v755 = vpop.f32.mrf.mxu0
    %v756 = vadd.f32 0.0, %v755
    %v757 = vpop.f32.mrf.mxu0
    %v758 = vpop.f32.mrf.mxu0
    %v759 = vadd.f32 0.0, %v758
    %v760 = vpop.f32.mrf.mxu0
    %761 = vmatprep.mubr.bf16.mxu0 0
    %762 = vmatmul.mubr.bf16.gmra.mxu0 %v259
    %v763 = vpop.f32.mrf.mxu0
    %v764 = vadd.f32 0.0, %v763
    %v765 = vpop.f32.mrf.mxu0
    %v766 = vpop.f32.mrf.mxu0
    %v767 = vadd.f32 0.0, %v766
    %v768 = vpop.f32.mrf.mxu0
    %769 = vmatprep.mubr.bf16.mxu0 0
    %770 = vmatmul.mubr.bf16.gmra.mxu0 %v262
    %v771 = vpop.f32.mrf.mxu0
    %v772 = vadd.f32 0.0, %v771
    %v773 = vpop.f32.mrf.mxu0
    %v774 = vpop.f32.mrf.mxu0
    %v775 = vadd.f32 0.0, %v774
    %v776 = vpop.f32.mrf.mxu0
    %777 = vmatprep.mubr.bf16.mxu0 0
    %778 = vmatmul.mubr.bf16.gmra.mxu0 %v265
    %v779 = vpop.f32.mrf.mxu0
    %v780 = vadd.f32 0.0, %v779
    %v781 = vpop.f32.mrf.mxu0
    %v782 = vpop.f32.mrf.mxu0
    %v783 = vadd.f32 0.0, %v782
    %v784 = vpop.f32.mrf.mxu0
    %785 = vdwg.mxu0
    %v786 = vmax.f32 %v756, 0.0
    %v787 = vmax.f32 %v759, 0.0
    %v788 = vmax.f32 %v764, 0.0
    %v789 = vmax.f32 %v767, 0.0
    %v790 = vmax.f32 %v772, 0.0
    %v791 = vmax.f32 %v775, 0.0
    %v792 = vmax.f32 %v780, 0.0
    %v793 = vmax.f32 %v783, 0.0
    %794 = vst [vmem:[#allocation3] sm:$0xff] %v786
    %795 = vst [vmem:[#allocation3 + $0x8] sm:$0xff] %v787
    %796 = vst [vmem:[#allocation3 + $0x10] sm:$0xff] %v788
    %797 = vst [vmem:[#allocation3 + $0x18] sm:$0xff] %v789
    %798 = vst [vmem:[#allocation3 + $0x20] sm:$0xff] %v790
    %799 = vst [vmem:[#allocation3 + $0x28] sm:$0xff] %v791
    %800 = vst [vmem:[#allocation3 + $0x30] sm:$0xff] %v792
    %801 = vst [vmem:[#allocation3 + $0x38] sm:$0xff] %v793
    %v802 = vld [vmem:[#allocation3] sm:$0xff]
    %v803 = vld [vmem:[#allocation3 + $0x8] sm:$0xff]
    %v804 = vld [vmem:[#allocation3 + $0x10] sm:$0xff]
    %v805 = vld [vmem:[#allocation3 + $0x18] sm:$0xff]
    %v806 = vld [vmem:[#allocation3 + $0x20] sm:$0xff]
    %v807 = vld [vmem:[#allocation3 + $0x28] sm:$0xff]
    %v808 = vld [vmem:[#allocation3 + $0x30] sm:$0xff]
    %v809 = vld [vmem:[#allocation3 + $0x38] sm:$0xff]
    %810 = vst [vmem:[#allocation10] sm:$0xff] %v802
    %811 = vst [vmem:[#allocation10 + $0x8] sm:$0xff] %v803
    %812 = vst [vmem:[#allocation10 + $0x10] sm:$0xff] %v804
    %813 = vst [vmem:[#allocation10 + $0x18] sm:$0xff] %v805
    %814 = vst [vmem:[#allocation10 + $0x20] sm:$0xff] %v806
    %815 = vst [vmem:[#allocation10 + $0x28] sm:$0xff] %v807
    %816 = vst [vmem:[#allocation10 + $0x30] sm:$0xff] %v808
    %817 = vst [vmem:[#allocation10 + $0x38] sm:$0xff] %v809
    // Predicated region
    $region26: #{tpu_custom_call.1} parent=1 // pred_check
      _
    $region27: #{tpu_custom_call.1} parent=1 // pred_check_branch
      %819 = sbr.rel (0) target = $region29
    $region28: #{tpu_custom_call.1} parent=1 // pred_region
      %s821 = ssub.s32 1024, 1024
      %822 = vsyncadd [#allocation6], %s821
      %s823 = sshll.u32 [#allocation10], 4
      %s824 = int_to_ptr.vmem [resolvable:$true] %s823
      %829 = dma.vmem_to_hbm [thread:$0]  %s824, 1024, %s3, [#allocation6], 128, 128, 8
    $region29: #{tpu_custom_call.1} parent=1 // pred_fallthru
      _
    // Predicated region
    $region30: #{tpu_custom_call.1} parent=1 // pred_check
      _
    $region31: #{tpu_custom_call.1} parent=1 // pred_check_branch
      %831 = sbr.rel (0) target = $region33
    $region32: #{tpu_custom_call.1} parent=1 // pred_region
      %832 = dma.done [#allocation6], 1024
    $region33: #{tpu_custom_call.1} parent=1 // pred_fallthru
      _
    %833 = vsyncpa [#allocation5], 1
    %834 = vsyncpa [#allocation8], 1
    %835 = vsyncpa [#allocation6], 1

</llo_original>
